<compile_context>
chip_gen: v6e
topology: v6e:2x2x1
jax: 0.10.0
libtpu: 0.0.40
codegen_flags: <defaults>
</compile_context>

<pallas_src>
import jax
import jax.numpy as jnp
from jax.experimental import pallas as pl
from jax.experimental.pallas import tpu as pltpu

EPS = 1e-8  # matches nn.GroupNorm(1, H, eps=1e-08) in the PyTorch module

# column layout of the packed per-channel constant array (H, 6+K)
_B1, _G1, _BE1, _BD, _G2, _BE2, _WD0 = 0, 1, 2, 3, 4, 5, 6


def _make_kernel(hid, t_in, t_out, ksz, dilation, padding):
    inv_n1 = 1.0 / float(hid * t_in)     # GroupNorm(1) normalizes over (C, T) per sample
    inv_n2 = 1.0 / float(hid * t_out)

    def kernel(x_ref, a_ref, w1_ref, cp_ref, wr_ref, ws_ref, brs_ref,
               res_ref, skip_ref, ypad_ref):
        f32 = jnp.float32

        # ---- 1x1 conv (Cin -> H) on the MXU; operands may be bf16, accumulate f32 ----
        y = jnp.dot(w1_ref[...], x_ref[...], preferred_element_type=f32)
        y = y + cp_ref[:, _B1:_B1 + 1]                                   # + b1

        # ---- PReLU #1 (single shared alpha, SMEM scalar path) ----
        a1 = a_ref[0]
        y = jnp.where(y >= 0, y, a1 * y)

        # ---- GroupNorm(1 group), per sample: two-pass mean/var, affine folded ----
        mean1 = jnp.sum(y) * inv_n1
        d1 = y - mean1
        var1 = jnp.sum(d1 * d1) * inv_n1
        scale1 = cp_ref[:, _G1:_G1 + 1] * jax.lax.rsqrt(var1 + EPS)      # g1 * rsqrt (EUP)
        y = d1 * scale1 + cp_ref[:, _BE1:_BE1 + 1]                       # + be1

        # ---- depthwise conv1d: zero-padded slab in VMEM scratch, K lane-offset
        #      slices scaled by the per-channel taps (no shift-matrix matmuls) ----
        if padding > 0:
            ypad_ref[:, 0:padding] = jnp.zeros((hid, padding), f32)
            ypad_ref[:, padding + t_in:padding + t_in + padding] = \
                jnp.zeros((hid, padding), f32)
        ypad_ref[:, padding:padding + t_in] = y

        acc = cp_ref[:, _BD:_BD + 1] + \
            cp_ref[:, _WD0:_WD0 + 1] * ypad_ref[:, 0:t_out]              # bd + tap 0
        for k in range(1, ksz):                                          # static unroll
            off = k * dilation
            acc = acc + cp_ref[:, _WD0 + k:_WD0 + k + 1] * \
                ypad_ref[:, off:off + t_out]

        # ---- PReLU #2 ----
        a2 = a_ref[1]
        z = jnp.where(acc >= 0, acc, a2 * acc)

        # ---- GroupNorm(1 group) #2 ----
        mean2 = jnp.sum(z) * inv_n2
        d2 = z - mean2
        var2 = jnp.sum(d2 * d2) * inv_n2
        scale2 = cp_ref[:, _G2:_G2 + 1] * jax.lax.rsqrt(var2 + EPS)
        z = d2 * scale2 + cp_ref[:, _BE2:_BE2 + 1]

        # ---- residual & skip 1x1 convs (MXU); two lane-dense output slabs ----
        zc = z.astype(wr_ref.dtype)
        res_ref[...] = (jnp.dot(wr_ref[...], zc, preferred_element_type=f32)
                        + brs_ref[:, 0:1]).astype(res_ref.dtype)
        skip_ref[...] = (jnp.dot(ws_ref[...], zc, preferred_element_type=f32)
                         + brs_ref[:, 1:2]).astype(skip_ref.dtype)

    return kernel


def _vmem_limit_bytes(cin, hid, t_in, t_out, ksz, pad, x_itemsize):
    """Padded-footprint estimate for vmem_limit_bytes (review item: size for 64 MiB v7x)."""
    rpad = lambda n, m: -(-n // m) * m
    f32 = 4
    t_pad = t_in + 2 * pad
    est = 0
    # streamed blocks (double buffered by BlockSpec pipelining)
    est += 2 * rpad(cin, 8) * rpad(t_in, 128) * x_itemsize               # x
    est += 2 * 2 * rpad(cin, 8) * rpad(t_out, 128) * f32                 # residual + skip
    # grid-invariant constants (index_map constant -> DMA'd once, still 2 buffers each)
    for r, c, isz in ((hid, cin, x_itemsize), (hid, 6 + ksz, f32),
                      (cin, hid, x_itemsize), (cin, hid, x_itemsize), (cin, 2, f32)):
        est += 2 * rpad(r, 8) * rpad(c, 128) * isz
    # scratch + in-flight f32 working slabs (y, d, z, temporaries)
    est += rpad(hid, 8) * rpad(t_pad, 128) * f32
    est += 5 * rpad(hid, 8) * rpad(max(t_in, t_out), 128) * f32
    est = int(est * 1.5) + (1 << 20)                                      # Mosaic temp headroom
    return max(32 << 20, min(est, 128 << 20))


def depth_conv1d(x, params, *, kernel_size, dilation, padding,
                 matmul_dtype=jnp.float32):
    """x: (B, Cin, T) float32. Returns (residual, skip), each (B, Cin, T_out)."""
    B, Cin, T = x.shape
    H = params["w1"].shape[0]
    K = kernel_size
    T_out = T + 2 * padding - dilation * (K - 1)
    assert T_out > 0

    f32 = jnp.float32
    md = jnp.dtype(matmul_dtype)
    col = lambda v: jnp.asarray(v, f32).reshape(-1, 1)

    # Pack all per-channel params + depthwise taps into one (H, 6+K) constant so the
    # ->128 lane padding in VMEM is paid once instead of per-vector.
    cparams = jnp.concatenate(
        [col(params["b1"]), col(params["g1"]), col(params["be1"]),
         col(params["bd"]), col(params["g2"]), col(params["be2"]),
         jnp.asarray(params["wd"], f32)], axis=1)                         # (H, 6+K)
    brs = jnp.concatenate([col(params["br"]), col(params["bs"])], axis=1)  # (Cin, 2)

    # MXU operands (optionally bf16, f32 accumulation); element-wise math stays f32.
    w1 = jnp.asarray(params["w1"], md)                                     # (H, Cin)
    wr = jnp.asarray(params["wr"], md)                                     # (Cin, H)
    ws = jnp.asarray(params["ws"], md)                                     # (Cin, H)
    xq = x.astype(md)                                                      # (B, Cin, T), native layout
    alphas = jnp.array([params["a1"], params["a2"]], f32)                  # (2,) -> SMEM

    consts = (w1, cparams, wr, ws, brs)

    def const_spec(arr):
        zeros = (0,) * arr.ndim
        return pl.BlockSpec(arr.shape, lambda b: zeros)

    in_specs = ([pl.BlockSpec((None, Cin, T), lambda b: (b, 0, 0)),        # one sample / step
                 pl.BlockSpec(memory_space=pltpu.MemorySpace.SMEM)]        # PReLU alphas
                + [const_spec(a) for a in consts])
    out_specs = [pl.BlockSpec((None, Cin, T_out), lambda b: (b, 0, 0)),
                 pl.BlockSpec((None, Cin, T_out), lambda b: (b, 0, 0))]

    residual, skip = pl.pallas_call(
        _make_kernel(H, T, T_out, K, dilation, padding),
        out_shape=(jax.ShapeDtypeStruct((B, Cin, T_out), f32),
                   jax.ShapeDtypeStruct((B, Cin, T_out), f32)),
        grid_spec=pltpu.PrefetchScalarGridSpec(
            num_scalar_prefetch=0,
            grid=(B,),                                                     # batch axis -> both TCs on v7x
            in_specs=in_specs,
            out_specs=out_specs,
            scratch_shapes=[pltpu.VMEM((H, T + 2 * padding), f32)],        # padded depthwise slab
        ),
        compiler_params=pltpu.CompilerParams(
            dimension_semantics=("parallel",),
            vmem_limit_bytes=_vmem_limit_bytes(Cin, H, T, T_out, K, padding, md.itemsize)),
    )(xq, alphas, *consts)
    return residual, skip


def ref_forward(x, p, *, kernel_size, dilation, padding):
    """Pure-JAX reference with the same semantics (for sanity checking)."""
    B, Cin, T = x.shape
    H, K = p["wd"].shape
    T_out = T + 2 * padding - dilation * (K - 1)

    y = jnp.einsum("hc,bct->bht", p["w1"], x) + p["b1"][None, :, None]
    y = jnp.where(y >= 0, y, p["a1"] * y)
    m = y.mean(axis=(1, 2), keepdims=True)
    v = jnp.square(y - m).mean(axis=(1, 2), keepdims=True)
    y = (y - m) / jnp.sqrt(v + EPS) * p["g1"][None, :, None] + p["be1"][None, :, None]

    ypad = jnp.pad(y, ((0, 0), (0, 0), (padding, padding)))
    z = jnp.zeros((B, H, T_out), jnp.float32)
    for k in range(K):
        z = z + p["wd"][None, :, k, None] * ypad[:, :, k * dilation:k * dilation + T_out]
    z = z + p["bd"][None, :, None]
    z = jnp.where(z >= 0, z, p["a2"] * z)
    m2 = z.mean(axis=(1, 2), keepdims=True)
    v2 = jnp.square(z - m2).mean(axis=(1, 2), keepdims=True)
    z = (z - m2) / jnp.sqrt(v2 + EPS) * p["g2"][None, :, None] + p["be2"][None, :, None]

    residual = jnp.einsum("ch,bht->bct", p["wr"], z) + p["br"][None, :, None]
    skip = jnp.einsum("ch,bht->bct", p["ws"], z) + p["bs"][None, :, None]
    return residual, skip


if __name__ == "__main__":
    # Module config (non-causal, skip=True): DepthConv1d(4, 32, kernel=3, padding=1, dilation=1)
    B, Cin, H, T = 2, 4, 32, 16
    K, DIL, PAD = 3, 1, 1

    key = jax.random.PRNGKey(0)
    ks = jax.random.split(key, 9)
    params = {
        # conv1d: 1x1 conv (Cin -> H)
        "w1": 0.1 * jax.random.normal(ks[0], (H, Cin), jnp.float32),
        "b1": 0.1 * jax.random.normal(ks[1], (H,), jnp.float32),
        "a1": jnp.float32(0.25),                              # PReLU default
        "g1": jnp.ones((H,), jnp.float32),                    # GroupNorm affine defaults
        "be1": jnp.zeros((H,), jnp.float32),
        # dconv1d: depthwise, weight (H, 1, K) -> stored as (H, K)
        "wd": 0.1 * jax.random.normal(ks[2], (H, K), jnp.float32),
        "bd": 0.1 * jax.random.normal(ks[3], (H,), jnp.float32),
        "a2": jnp.float32(0.25),
        "g2": jnp.ones((H,), jnp.float32),
        "be2": jnp.zeros((H,), jnp.float32),
        # res_out / skip_out: 1x1 convs (H -> Cin)
        "wr": 0.1 * jax.random.normal(ks[4], (Cin, H), jnp.float32),
        "br": 0.1 * jax.random.normal(ks[5], (Cin,), jnp.float32),
        "ws": 0.1 * jax.random.normal(ks[6], (Cin, H), jnp.float32),
        "bs": 0.1 * jax.random.normal(ks[7], (Cin,), jnp.float32),
    }
    x = jax.random.normal(ks[8], (B, Cin, T), jnp.float32)

    res_ref, skp_ref = ref_forward(x, params, kernel_size=K, dilation=DIL, padding=PAD)

    # f32 path: tight tolerance against the reference.
    res, skp = depth_conv1d(x, params, kernel_size=K, dilation=DIL, padding=PAD)
    res, skp = jax.block_until_ready((res, skp))
    assert jnp.allclose(res, res_ref, atol=2e-4, rtol=2e-4)
    assert jnp.allclose(skp, skp_ref, atol=2e-4, rtol=2e-4)

    # bf16 MXU-operand path (halves streamed HBM traffic, 2x MXU rate); looser tolerance.
    res_b, skp_b = depth_conv1d(x, params, kernel_size=K, dilation=DIL, padding=PAD,
                                matmul_dtype=jnp.bfloat16)
    res_b, skp_b = jax.block_until_ready((res_b, skp_b))
    assert jnp.allclose(res_b, res_ref, atol=5e-2, rtol=5e-2)
    assert jnp.allclose(skp_b, skp_ref, atol=5e-2, rtol=5e-2)

    print("KERNEL_OK")
</pallas_src>

<mosaic_0001>
module attributes {stable_mosaic.version = 11 : i64} {
  func.func @kernel(%arg0: i32, %arg1: memref<1x4x16xf32, #tpu.memory_space<vmem>>, %arg2: memref<2xf32, #tpu.memory_space<smem>>, %arg3: memref<32x4xf32, #tpu.memory_space<vmem>>, %arg4: memref<32x9xf32, #tpu.memory_space<vmem>>, %arg5: memref<4x32xf32, #tpu.memory_space<vmem>>, %arg6: memref<4x32xf32, #tpu.memory_space<vmem>>, %arg7: memref<4x2xf32, #tpu.memory_space<vmem>>, %arg8: memref<1x4x16xf32, #tpu.memory_space<vmem>>, %arg9: memref<1x4x16xf32, #tpu.memory_space<vmem>>, %arg10: memref<32x18xf32, #tpu.memory_space<vmem>>) attributes {dimension_semantics = [#tpu.dimension_semantics<parallel>], iteration_bounds = array<i64: 2>, scalar_prefetch = 0 : i64, scratch_operands = 1 : i64, tpu.core_type = #tpu.core_type<tc>, window_params = [{transform_indices = @transform_0, window_bounds = array<i64: 1, 4, 16>}, {transform_indices = @transform_1, window_bounds = array<i64: 2>}, {pipeline_mode = #tpu.pipeline_mode<synchronous>, transform_indices = @transform_2, window_bounds = array<i64: 32, 4>}, {pipeline_mode = #tpu.pipeline_mode<synchronous>, transform_indices = @transform_3, window_bounds = array<i64: 32, 9>}, {pipeline_mode = #tpu.pipeline_mode<synchronous>, transform_indices = @transform_4, window_bounds = array<i64: 4, 32>}, {pipeline_mode = #tpu.pipeline_mode<synchronous>, transform_indices = @transform_5, window_bounds = array<i64: 4, 32>}, {pipeline_mode = #tpu.pipeline_mode<synchronous>, transform_indices = @transform_6, window_bounds = array<i64: 4, 2>}, {transform_indices = @transform_7, window_bounds = array<i64: 1, 4, 16>}, {transform_indices = @transform_8, window_bounds = array<i64: 1, 4, 16>}]} {
    %c0 = arith.constant 0 : index
    %c0_0 = arith.constant 0 : index
    %0 = vector.load %arg3[%c0, %c0_0] : memref<32x4xf32, #tpu.memory_space<vmem>>, vector<32x4xf32>
    %c0_1 = arith.constant 0 : index
    %c0_2 = arith.constant 0 : index
    %c0_3 = arith.constant 0 : index
    %1 = vector.load %arg1[%c0_1, %c0_2, %c0_3] : memref<1x4x16xf32, #tpu.memory_space<vmem>>, vector<1x4x16xf32>
    %2 = vector.shape_cast %1 : vector<1x4x16xf32> to vector<4x16xf32>
    %cst = arith.constant dense<0.000000e+00> : vector<32x16xf32>
    %3 = tpu.matmul %0, %2, %cst {dimension_numbers = #tpu.dot_dimension_numbers<[1], [0], [0], [1], [0, 0, 1, 1], [], []>} : vector<32x4xf32>, vector<4x16xf32>, vector<32x16xf32> -> vector<32x16xf32>
    %c0_4 = arith.constant 0 : index
    %c0_5 = arith.constant 0 : index
    %4 = vector.load %arg4[%c0_4, %c0_5] : memref<32x9xf32, #tpu.memory_space<vmem>>, vector<32x1xf32>
    %5 = vector.broadcast %4 : vector<32x1xf32> to vector<32x16xf32>
    %6 = arith.addf %3, %5 : vector<32x16xf32>
    %c0_6 = arith.constant 0 : index
    %7 = memref.load %arg2[%c0_6] : memref<2xf32, #tpu.memory_space<smem>>
    %cst_7 = arith.constant 0.000000e+00 : f32
    %8 = vector.broadcast %cst_7 : f32 to vector<32x16xf32>
    %9 = arith.cmpf oge, %6, %8 : vector<32x16xf32>
    %10 = vector.broadcast %7 : f32 to vector<32x16xf32>
    %11 = arith.mulf %10, %6 : vector<32x16xf32>
    %12 = arith.select %9, %6, %11 : vector<32x16xi1>, vector<32x16xf32>
    %13 = vector.shape_cast %12 : vector<32x16xf32> to vector<1x32x16xf32>
    %cst_8 = arith.constant dense<0.000000e+00> : vector<1xf32>
    %14 = vector.multi_reduction <add>, %13, %cst_8 [1, 2] : vector<1x32x16xf32> to vector<1xf32>
    %15 = vector.shape_cast %14 : vector<1xf32> to vector<1x1x1xf32>
    %16 = vector.extract %15[0, 0, 0] : f32 from vector<1x1x1xf32>
    %cst_9 = arith.constant 0.001953125 : f32
    %17 = arith.mulf %16, %cst_9 : f32
    %18 = vector.broadcast %17 : f32 to vector<32x16xf32>
    %19 = arith.subf %12, %18 : vector<32x16xf32>
    %20 = arith.mulf %19, %19 : vector<32x16xf32>
    %21 = vector.shape_cast %20 : vector<32x16xf32> to vector<1x32x16xf32>
    %cst_10 = arith.constant dense<0.000000e+00> : vector<1xf32>
    %22 = vector.multi_reduction <add>, %21, %cst_10 [1, 2] : vector<1x32x16xf32> to vector<1xf32>
    %23 = vector.shape_cast %22 : vector<1xf32> to vector<1x1x1xf32>
    %24 = vector.extract %23[0, 0, 0] : f32 from vector<1x1x1xf32>
    %cst_11 = arith.constant 0.001953125 : f32
    %25 = arith.mulf %24, %cst_11 : f32
    %c0_12 = arith.constant 0 : index
    %c1 = arith.constant 1 : index
    %26 = vector.load %arg4[%c0_12, %c1] : memref<32x9xf32, #tpu.memory_space<vmem>>, vector<32x1xf32>
    %cst_13 = arith.constant 9.99999993E-9 : f32
    %27 = arith.addf %25, %cst_13 : f32
    %28 = math.rsqrt %27 : f32
    %29 = vector.broadcast %28 : f32 to vector<32x1xf32>
    %30 = arith.mulf %26, %29 : vector<32x1xf32>
    %31 = vector.broadcast %30 : vector<32x1xf32> to vector<32x16xf32>
    %32 = arith.mulf %19, %31 : vector<32x16xf32>
    %c0_14 = arith.constant 0 : index
    %c2 = arith.constant 2 : index
    %33 = vector.load %arg4[%c0_14, %c2] : memref<32x9xf32, #tpu.memory_space<vmem>>, vector<32x1xf32>
    %34 = vector.broadcast %33 : vector<32x1xf32> to vector<32x16xf32>
    %35 = arith.addf %32, %34 : vector<32x16xf32>
    %cst_15 = arith.constant 0.000000e+00 : f32
    %36 = vector.broadcast %cst_15 : f32 to vector<32x1xf32>
    %c0_16 = arith.constant 0 : index
    %c0_17 = arith.constant 0 : index
    %37 = vector.load %arg10[%c0_16, %c0_17] : memref<32x18xf32, #tpu.memory_space<vmem>>, vector<32x1xf32>
    tpu.vector_store %arg10[%c0_16, %c0_17], %36 {strides = array<i32>} : memref<32x18xf32, #tpu.memory_space<vmem>>, vector<32x1xf32>,
    %cst_18 = arith.constant 0.000000e+00 : f32
    %38 = vector.broadcast %cst_18 : f32 to vector<32x1xf32>
    %c0_19 = arith.constant 0 : index
    %c17 = arith.constant 17 : index
    %39 = vector.load %arg10[%c0_19, %c17] : memref<32x18xf32, #tpu.memory_space<vmem>>, vector<32x1xf32>
    tpu.vector_store %arg10[%c0_19, %c17], %38 {strides = array<i32>} : memref<32x18xf32, #tpu.memory_space<vmem>>, vector<32x1xf32>,
    %c0_20 = arith.constant 0 : index
    %c1_21 = arith.constant 1 : index
    %40 = vector.load %arg10[%c0_20, %c1_21] : memref<32x18xf32, #tpu.memory_space<vmem>>, vector<32x16xf32>
    tpu.vector_store %arg10[%c0_20, %c1_21], %35 {strides = array<i32>} : memref<32x18xf32, #tpu.memory_space<vmem>>, vector<32x16xf32>,
    %c0_22 = arith.constant 0 : index
    %c3 = arith.constant 3 : index
    %41 = vector.load %arg4[%c0_22, %c3] : memref<32x9xf32, #tpu.memory_space<vmem>>, vector<32x1xf32>
    %c0_23 = arith.constant 0 : index
    %c6 = arith.constant 6 : index
    %42 = vector.load %arg4[%c0_23, %c6] : memref<32x9xf32, #tpu.memory_space<vmem>>, vector<32x1xf32>
    %c0_24 = arith.constant 0 : index
    %c0_25 = arith.constant 0 : index
    %43 = vector.load %arg10[%c0_24, %c0_25] : memref<32x18xf32, #tpu.memory_space<vmem>>, vector<32x16xf32>
    %44 = vector.broadcast %42 : vector<32x1xf32> to vector<32x16xf32>
    %45 = arith.mulf %44, %43 : vector<32x16xf32>
    %46 = vector.broadcast %41 : vector<32x1xf32> to vector<32x16xf32>
    %47 = arith.addf %46, %45 : vector<32x16xf32>
    %c0_26 = arith.constant 0 : index
    %c7 = arith.constant 7 : index
    %48 = vector.load %arg4[%c0_26, %c7] : memref<32x9xf32, #tpu.memory_space<vmem>>, vector<32x1xf32>
    %c0_27 = arith.constant 0 : index
    %c1_28 = arith.constant 1 : index
    %49 = vector.load %arg10[%c0_27, %c1_28] : memref<32x18xf32, #tpu.memory_space<vmem>>, vector<32x16xf32>
    %50 = vector.broadcast %48 : vector<32x1xf32> to vector<32x16xf32>
    %51 = arith.mulf %50, %49 : vector<32x16xf32>
    %52 = arith.addf %47, %51 : vector<32x16xf32>
    %c0_29 = arith.constant 0 : index
    %c8 = arith.constant 8 : index
    %53 = vector.load %arg4[%c0_29, %c8] : memref<32x9xf32, #tpu.memory_space<vmem>>, vector<32x1xf32>
    %c0_30 = arith.constant 0 : index
    %c2_31 = arith.constant 2 : index
    %54 = vector.load %arg10[%c0_30, %c2_31] : memref<32x18xf32, #tpu.memory_space<vmem>>, vector<32x16xf32>
    %55 = vector.broadcast %53 : vector<32x1xf32> to vector<32x16xf32>
    %56 = arith.mulf %55, %54 : vector<32x16xf32>
    %57 = arith.addf %52, %56 : vector<32x16xf32>
    %c1_32 = arith.constant 1 : index
    %58 = memref.load %arg2[%c1_32] : memref<2xf32, #tpu.memory_space<smem>>
    %cst_33 = arith.constant 0.000000e+00 : f32
    %59 = vector.broadcast %cst_33 : f32 to vector<32x16xf32>
    %60 = arith.cmpf oge, %57, %59 : vector<32x16xf32>
    %61 = vector.broadcast %58 : f32 to vector<32x16xf32>
    %62 = arith.mulf %61, %57 : vector<32x16xf32>
    %63 = arith.select %60, %57, %62 : vector<32x16xi1>, vector<32x16xf32>
    %64 = vector.shape_cast %63 : vector<32x16xf32> to vector<1x32x16xf32>
    %cst_34 = arith.constant dense<0.000000e+00> : vector<1xf32>
    %65 = vector.multi_reduction <add>, %64, %cst_34 [1, 2] : vector<1x32x16xf32> to vector<1xf32>
    %66 = vector.shape_cast %65 : vector<1xf32> to vector<1x1x1xf32>
    %67 = vector.extract %66[0, 0, 0] : f32 from vector<1x1x1xf32>
    %cst_35 = arith.constant 0.001953125 : f32
    %68 = arith.mulf %67, %cst_35 : f32
    %69 = vector.broadcast %68 : f32 to vector<32x16xf32>
    %70 = arith.subf %63, %69 : vector<32x16xf32>
    %71 = arith.mulf %70, %70 : vector<32x16xf32>
    %72 = vector.shape_cast %71 : vector<32x16xf32> to vector<1x32x16xf32>
    %cst_36 = arith.constant dense<0.000000e+00> : vector<1xf32>
    %73 = vector.multi_reduction <add>, %72, %cst_36 [1, 2] : vector<1x32x16xf32> to vector<1xf32>
    %74 = vector.shape_cast %73 : vector<1xf32> to vector<1x1x1xf32>
    %75 = vector.extract %74[0, 0, 0] : f32 from vector<1x1x1xf32>
    %cst_37 = arith.constant 0.001953125 : f32
    %76 = arith.mulf %75, %cst_37 : f32
    %c0_38 = arith.constant 0 : index
    %c4 = arith.constant 4 : index
    %77 = vector.load %arg4[%c0_38, %c4] : memref<32x9xf32, #tpu.memory_space<vmem>>, vector<32x1xf32>
    %cst_39 = arith.constant 9.99999993E-9 : f32
    %78 = arith.addf %76, %cst_39 : f32
    %79 = math.rsqrt %78 : f32
    %80 = vector.broadcast %79 : f32 to vector<32x1xf32>
    %81 = arith.mulf %77, %80 : vector<32x1xf32>
    %82 = vector.broadcast %81 : vector<32x1xf32> to vector<32x16xf32>
    %83 = arith.mulf %70, %82 : vector<32x16xf32>
    %c0_40 = arith.constant 0 : index
    %c5 = arith.constant 5 : index
    %84 = vector.load %arg4[%c0_40, %c5] : memref<32x9xf32, #tpu.memory_space<vmem>>, vector<32x1xf32>
    %85 = vector.broadcast %84 : vector<32x1xf32> to vector<32x16xf32>
    %86 = arith.addf %83, %85 : vector<32x16xf32>
    %c0_41 = arith.constant 0 : index
    %c0_42 = arith.constant 0 : index
    %87 = vector.load %arg5[%c0_41, %c0_42] : memref<4x32xf32, #tpu.memory_space<vmem>>, vector<4x32xf32>
    %cst_43 = arith.constant dense<0.000000e+00> : vector<4x16xf32>
    %88 = tpu.matmul %87, %86, %cst_43 {dimension_numbers = #tpu.dot_dimension_numbers<[1], [0], [0], [1], [0, 0, 1, 1], [], []>} : vector<4x32xf32>, vector<32x16xf32>, vector<4x16xf32> -> vector<4x16xf32>
    %c0_44 = arith.constant 0 : index
    %c0_45 = arith.constant 0 : index
    %89 = vector.load %arg7[%c0_44, %c0_45] : memref<4x2xf32, #tpu.memory_space<vmem>>, vector<4x1xf32>
    %90 = vector.broadcast %89 : vector<4x1xf32> to vector<4x16xf32>
    %91 = arith.addf %88, %90 : vector<4x16xf32>
    %c0_46 = arith.constant 0 : index
    %c0_47 = arith.constant 0 : index
    %c0_48 = arith.constant 0 : index
    %92 = vector.load %arg8[%c0_46, %c0_47, %c0_48] : memref<1x4x16xf32, #tpu.memory_space<vmem>>, vector<1x4x16xf32>
    %93 = vector.shape_cast %92 : vector<1x4x16xf32> to vector<4x16xf32>
    %94 = vector.shape_cast %91 : vector<4x16xf32> to vector<1x4x16xf32>
    tpu.vector_store %arg8[%c0_46, %c0_47, %c0_48], %94 {strides = array<i32>} : memref<1x4x16xf32, #tpu.memory_space<vmem>>, vector<1x4x16xf32>,
    %c0_49 = arith.constant 0 : index
    %c0_50 = arith.constant 0 : index
    %95 = vector.load %arg6[%c0_49, %c0_50] : memref<4x32xf32, #tpu.memory_space<vmem>>, vector<4x32xf32>
    %cst_51 = arith.constant dense<0.000000e+00> : vector<4x16xf32>
    %96 = tpu.matmul %95, %86, %cst_51 {dimension_numbers = #tpu.dot_dimension_numbers<[1], [0], [0], [1], [0, 0, 1, 1], [], []>} : vector<4x32xf32>, vector<32x16xf32>, vector<4x16xf32> -> vector<4x16xf32>
    %c0_52 = arith.constant 0 : index
    %c1_53 = arith.constant 1 : index
    %97 = vector.load %arg7[%c0_52, %c1_53] : memref<4x2xf32, #tpu.memory_space<vmem>>, vector<4x1xf32>
    %98 = vector.broadcast %97 : vector<4x1xf32> to vector<4x16xf32>
    %99 = arith.addf %96, %98 : vector<4x16xf32>
    %c0_54 = arith.constant 0 : index
    %c0_55 = arith.constant 0 : index
    %c0_56 = arith.constant 0 : index
    %100 = vector.load %arg9[%c0_54, %c0_55, %c0_56] : memref<1x4x16xf32, #tpu.memory_space<vmem>>, vector<1x4x16xf32>
    %101 = vector.shape_cast %100 : vector<1x4x16xf32> to vector<4x16xf32>
    %102 = vector.shape_cast %99 : vector<4x16xf32> to vector<1x4x16xf32>
    tpu.vector_store %arg9[%c0_54, %c0_55, %c0_56], %102 {strides = array<i32>} : memref<1x4x16xf32, #tpu.memory_space<vmem>>, vector<1x4x16xf32>,
    return
  }
  func.func @transform_0(%arg0: i32) -> (i32, i32, i32) {
    %c0_i32 = arith.constant 0 : i32
    %c0_i32_0 = arith.constant 0 : i32
    %c0_i32_1 = arith.constant 0 : i32
    return %arg0, %c0_i32, %c0_i32_0 : i32, i32, i32
  }
  func.func @transform_1(%arg0: i32) -> i32 {
    %c0_i32 = arith.constant 0 : i32
    %c0_i32_0 = arith.constant 0 : i32
    return %c0_i32 : i32
  }
  func.func @transform_2(%arg0: i32) -> (i32, i32) {
    %c0_i32 = arith.constant 0 : i32
    %c0_i32_0 = arith.constant 0 : i32
    %c0_i32_1 = arith.constant 0 : i32
    return %c0_i32, %c0_i32_0 : i32, i32
  }
  func.func @transform_3(%arg0: i32) -> (i32, i32) {
    %c0_i32 = arith.constant 0 : i32
    %c0_i32_0 = arith.constant 0 : i32
    %c0_i32_1 = arith.constant 0 : i32
    return %c0_i32, %c0_i32_0 : i32, i32
  }
  func.func @transform_4(%arg0: i32) -> (i32, i32) {
    %c0_i32 = arith.constant 0 : i32
    %c0_i32_0 = arith.constant 0 : i32
    %c0_i32_1 = arith.constant 0 : i32
    return %c0_i32, %c0_i32_0 : i32, i32
  }
  func.func @transform_5(%arg0: i32) -> (i32, i32) {
    %c0_i32 = arith.constant 0 : i32
    %c0_i32_0 = arith.constant 0 : i32
    %c0_i32_1 = arith.constant 0 : i32
    return %c0_i32, %c0_i32_0 : i32, i32
  }
  func.func @transform_6(%arg0: i32) -> (i32, i32) {
    %c0_i32 = arith.constant 0 : i32
    %c0_i32_0 = arith.constant 0 : i32
    %c0_i32_1 = arith.constant 0 : i32
    return %c0_i32, %c0_i32_0 : i32, i32
  }
  func.func @transform_7(%arg0: i32) -> (i32, i32, i32) {
    %c0_i32 = arith.constant 0 : i32
    %c0_i32_0 = arith.constant 0 : i32
    %c0_i32_1 = arith.constant 0 : i32
    return %arg0, %c0_i32, %c0_i32_0 : i32, i32, i32
  }
  func.func @transform_8(%arg0: i32) -> (i32, i32, i32) {
    %c0_i32 = arith.constant 0 : i32
    %c0_i32_0 = arith.constant 0 : i32
    %c0_i32_1 = arith.constant 0 : i32
    return %arg0, %c0_i32, %c0_i32_0 : i32, i32, i32
  }
}

</mosaic_0001>

<llo_original>
// kernel: tpu_custom_call.1
$region0: #{tpu_custom_call.1}
  #allocation0 [shape = 'u32[]', space=smem, size = 0x4, offset = 0x4, fixed_abs, tag = 'smem constant byte address 0x4 - core index']
  #allocation1 [shape = 'u32[144,128]{1,0:T(1,128)}', space=vmem, size = 0x12000, scoped, tag = 'internal scratch']
  #allocation2 [shape = 'f32[32,18]{1,0:T(8,128)}', space=vmem, size = 0x4000, scoped, tag = 'scratch operand']
  %s0 = inlined_call_operand.vmem [shape: f32[2,4,16], index: 0, kind: input, shape index: {}]
  %s1 = inlined_call_operand.vmem [shape: f32[2], index: 1, kind: input, shape index: {}]
  %s2 = inlined_call_operand.vmem [shape: f32[32,4], index: 2, kind: input, shape index: {}]
  %s3 = inlined_call_operand.vmem [shape: f32[32,9], index: 3, kind: input, shape index: {}]
  %s4 = inlined_call_operand.vmem [shape: f32[4,32], index: 4, kind: input, shape index: {}]
  %s5 = inlined_call_operand.vmem [shape: f32[4,32], index: 5, kind: input, shape index: {}]
  %s6 = inlined_call_operand.vmem [shape: f32[4,2], index: 6, kind: input, shape index: {}]
  %s7 = inlined_call_operand.hbm [shape: f32[2,4,16], index: 7, kind: output, shape index: {0}]
  %s8 = inlined_call_operand.hbm [shape: f32[2,4,16], index: 8, kind: output, shape index: {1}]
  %9 = xla_tuple %s7, %s8
  %s10 = sld [smem:[#allocation0]]
  $region73: #{tpu_custom_call.1} parent=0
    _
  %s12 = ssub.s32 1, %s10
  %s13 = scalar_select 0, %s12, %s10
  $region1: #{tpu_custom_call.1} parent=0
    #allocation3 [shape = 'u8[512]{0}', space=smem, size = 0x200, scoped, tag = 'input window, operand 1, single buffered']
    #allocation4 [shape = 's32[2]{0}', space=sflag, size = 0x8, scoped, tag = 'scoped memory for tpu_custom_call.1']
    #allocation5 [shape = 's32[2]{0}', space=sflag, size = 0x8, scoped, tag = 'scoped memory for tpu_custom_call.1']
    #allocation6 [shape = 'u8[4096]{0}', space=vmem, size = 0x1000, scoped, tag = 'output window, operand 0']
    #allocation7 [shape = 'u8[4096]{0}', space=vmem, size = 0x1000, scoped, tag = 'output window, operand 1']
    #allocation8 [shape = 's32[2]{0}', space=sflag, size = 0x8, scoped, tag = 'scoped memory for tpu_custom_call.1']
    %14 = vsyncpa [#allocation5], 0
    %15 = vsyncpa [#allocation4], 0
    %s16 = scalar_lea.sflag [#allocation4], 1
    %17 = vsyncpa %s16, 0
    %18 = vsyncpa [#allocation8], 0
    %s19 = scalar_lea.sflag [#allocation8], 1
    %20 = vsyncpa %s19, 0
    loop: start=0, step=1, limit=4
    $region2: #{tpu_custom_call.1} parent=1 // loop_pre_header
      _
    $region3: #{tpu_custom_call.1} parent=1 // loop_header
      %s22 = sphi 0, %s26
      %p23 = scmp.ge.s32.totalorder %s22, 4
      %s32 = sphi 0, %s34
      %s35 = sphi 0, %s32
      %s36 = sphi 0, %s35
      %s52 = sphi 0, %s36
      %s56 = sphi 0, %s56
      %s58 = sphi 0, %s56
      %s59 = sphi 0, %s58
      %s73 = sphi 0, %s59
      %s77 = sphi 0, %s77
      %s79 = sphi 0, %s77
      %s80 = sphi 0, %s79
      %s94 = sphi 0, %s80
      %s98 = sphi 0, %s98
      %s100 = sphi 0, %s98
      %s101 = sphi 0, %s100
      %s115 = sphi 0, %s101
      %s119 = sphi 0, %s119
      %s121 = sphi 0, %s119
      %s122 = sphi 0, %s121
      %s136 = sphi 0, %s122
      %s140 = sphi 0, %s140
      %s142 = sphi 0, %s140
      %s143 = sphi 0, %s142
      %s157 = sphi 0, %s143
      %s161 = sphi 0, %s161
      %s163 = sphi 0, %s161
      %s164 = sphi 0, %s163
      %s178 = sphi 0, %s164
      %s184 = sphi 0, %s186
      %s187 = sphi 0, %s184
      %s188 = sphi 0, %s187
      %s204 = sphi 0, %s188
      %s210 = sphi 0, %s212
      %s213 = sphi 0, %s210
      %s214 = sphi 0, %s213
      %s230 = sphi 0, %s214
    $region4: #{tpu_custom_call.1} parent=1 // loop_header_branch
      %25 = sbr.rel (%p23) target = $region8
    $region5: #{tpu_custom_call.1} parent=1 // loop_body
      %s27 = ssub.s32 %s22, 1
      %s28 = ssub.s32 %s22, 2
      %s29 = sadd.s32 %s22, 1
      %s30 = ssub.s32 %s22, %s29
      %p31 = scmp.eq.s32.totalorder %s30, 0
      %s33 = sadd.s32 %s32, 1
      %s34 = scalar_select %p31, %s32, %s33
      %p37 = pneg %p31
      %p38 = scmp.eq.s32.totalorder %s22, 1
      %p39 = por %p37, %p38
      %p40 = scmp.ne.s32.totalorder %s32, %s35
      %p41 = scmp.eq.s32.totalorder %s22, 0
      %p42 = por %p40, %p41
      %p43 = scmp.ne.s32.totalorder %s32, %s35
      %p44 = scmp.eq.s32.totalorder %s27, 1
      %p45 = por %p43, %p44
      %p46 = scmp.ne.s32.totalorder %s35, %s36
      %p47 = scmp.eq.s32.totalorder %s27, 0
      %p48 = por %p46, %p47
      %p49 = scmp.ne.s32.totalorder %s35, %s36
      %p50 = scmp.eq.s32.totalorder %s28, 1
      %p51 = por %p49, %p50
      %p53 = scmp.ne.s32.totalorder %s36, %s52
      %p54 = scmp.eq.s32.totalorder %s28, 0
      %p55 = por %p53, %p54
      %s57 = sadd.s32 %s56, 1
      %p60 = scmp.eq.s32.totalorder %s22, 1
      %p61 = scmp.ne.s32.totalorder %s56, %s58
      %p62 = scmp.eq.s32.totalorder %s22, 0
      %p63 = por %p61, %p62
      %p64 = scmp.ne.s32.totalorder %s56, %s58
      %p65 = scmp.eq.s32.totalorder %s27, 1
      %p66 = por %p64, %p65
      %p67 = scmp.ne.s32.totalorder %s58, %s59
      %p68 = scmp.eq.s32.totalorder %s27, 0
      %p69 = por %p67, %p68
      %p70 = scmp.ne.s32.totalorder %s58, %s59
      %p71 = scmp.eq.s32.totalorder %s28, 1
      %p72 = por %p70, %p71
      %p74 = scmp.ne.s32.totalorder %s59, %s73
      %p75 = scmp.eq.s32.totalorder %s28, 0
      %p76 = por %p74, %p75
      %s78 = sadd.s32 %s77, 1
      %p81 = scmp.eq.s32.totalorder %s22, 1
      %p82 = scmp.ne.s32.totalorder %s77, %s79
      %p83 = scmp.eq.s32.totalorder %s22, 0
      %p84 = por %p82, %p83
      %p85 = scmp.ne.s32.totalorder %s77, %s79
      %p86 = scmp.eq.s32.totalorder %s27, 1
      %p87 = por %p85, %p86
      %p88 = scmp.ne.s32.totalorder %s79, %s80
      %p89 = scmp.eq.s32.totalorder %s27, 0
      %p90 = por %p88, %p89
      %p91 = scmp.ne.s32.totalorder %s79, %s80
      %p92 = scmp.eq.s32.totalorder %s28, 1
      %p93 = por %p91, %p92
      %p95 = scmp.ne.s32.totalorder %s80, %s94
      %p96 = scmp.eq.s32.totalorder %s28, 0
      %p97 = por %p95, %p96
      %s99 = sadd.s32 %s98, 1
      %p102 = scmp.eq.s32.totalorder %s22, 1
      %p103 = scmp.ne.s32.totalorder %s98, %s100
      %p104 = scmp.eq.s32.totalorder %s22, 0
      %p105 = por %p103, %p104
      %p106 = scmp.ne.s32.totalorder %s98, %s100
      %p107 = scmp.eq.s32.totalorder %s27, 1
      %p108 = por %p106, %p107
      %p109 = scmp.ne.s32.totalorder %s100, %s101
      %p110 = scmp.eq.s32.totalorder %s27, 0
      %p111 = por %p109, %p110
      %p112 = scmp.ne.s32.totalorder %s100, %s101
      %p113 = scmp.eq.s32.totalorder %s28, 1
      %p114 = por %p112, %p113
      %p116 = scmp.ne.s32.totalorder %s101, %s115
      %p117 = scmp.eq.s32.totalorder %s28, 0
      %p118 = por %p116, %p117
      %s120 = sadd.s32 %s119, 1
      %p123 = scmp.eq.s32.totalorder %s22, 1
      %p124 = scmp.ne.s32.totalorder %s119, %s121
      %p125 = scmp.eq.s32.totalorder %s22, 0
      %p126 = por %p124, %p125
      %p127 = scmp.ne.s32.totalorder %s119, %s121
      %p128 = scmp.eq.s32.totalorder %s27, 1
      %p129 = por %p127, %p128
      %p130 = scmp.ne.s32.totalorder %s121, %s122
      %p131 = scmp.eq.s32.totalorder %s27, 0
      %p132 = por %p130, %p131
      %p133 = scmp.ne.s32.totalorder %s121, %s122
      %p134 = scmp.eq.s32.totalorder %s28, 1
      %p135 = por %p133, %p134
      %p137 = scmp.ne.s32.totalorder %s122, %s136
      %p138 = scmp.eq.s32.totalorder %s28, 0
      %p139 = por %p137, %p138
      %s141 = sadd.s32 %s140, 1
      %p144 = scmp.eq.s32.totalorder %s22, 1
      %p145 = scmp.ne.s32.totalorder %s140, %s142
      %p146 = scmp.eq.s32.totalorder %s22, 0
      %p147 = por %p145, %p146
      %p148 = scmp.ne.s32.totalorder %s140, %s142
      %p149 = scmp.eq.s32.totalorder %s27, 1
      %p150 = por %p148, %p149
      %p151 = scmp.ne.s32.totalorder %s142, %s143
      %p152 = scmp.eq.s32.totalorder %s27, 0
      %p153 = por %p151, %p152
      %p154 = scmp.ne.s32.totalorder %s142, %s143
      %p155 = scmp.eq.s32.totalorder %s28, 1
      %p156 = por %p154, %p155
      %p158 = scmp.ne.s32.totalorder %s143, %s157
      %p159 = scmp.eq.s32.totalorder %s28, 0
      %p160 = por %p158, %p159
      %s162 = sadd.s32 %s161, 1
      %p165 = scmp.eq.s32.totalorder %s22, 1
      %p166 = scmp.ne.s32.totalorder %s161, %s163
      %p167 = scmp.eq.s32.totalorder %s22, 0
      %p168 = por %p166, %p167
      %p169 = scmp.ne.s32.totalorder %s161, %s163
      %p170 = scmp.eq.s32.totalorder %s27, 1
      %p171 = por %p169, %p170
      %p172 = scmp.ne.s32.totalorder %s163, %s164
      %p173 = scmp.eq.s32.totalorder %s27, 0
      %p174 = por %p172, %p173
      %p175 = scmp.ne.s32.totalorder %s163, %s164
      %p176 = scmp.eq.s32.totalorder %s28, 1
      %p177 = por %p175, %p176
      %p179 = scmp.ne.s32.totalorder %s164, %s178
      %p180 = scmp.eq.s32.totalorder %s28, 0
      %p181 = por %p179, %p180
      %s182 = ssub.s32 %s22, %s29
      %p183 = scmp.eq.s32.totalorder %s182, 0
      %s185 = sadd.s32 %s184, 1
      %s186 = scalar_select %p183, %s184, %s185
      %p189 = pneg %p183
      %p190 = scmp.eq.s32.totalorder %s22, 1
      %p191 = por %p189, %p190
      %p192 = scmp.ne.s32.totalorder %s184, %s187
      %p193 = scmp.eq.s32.totalorder %s22, 0
      %p194 = por %p192, %p193
      %p195 = scmp.ne.s32.totalorder %s184, %s187
      %p196 = scmp.eq.s32.totalorder %s27, 1
      %p197 = por %p195, %p196
      %p198 = scmp.ne.s32.totalorder %s187, %s188
      %p199 = scmp.eq.s32.totalorder %s27, 0
      %p200 = por %p198, %p199
      %p201 = scmp.ne.s32.totalorder %s187, %s188
      %p202 = scmp.eq.s32.totalorder %s28, 1
      %p203 = por %p201, %p202
      %p205 = scmp.ne.s32.totalorder %s188, %s204
      %p206 = scmp.eq.s32.totalorder %s28, 0
      %p207 = por %p205, %p206
      %s208 = ssub.s32 %s22, %s29
      %p209 = scmp.eq.s32.totalorder %s208, 0
      %s211 = sadd.s32 %s210, 1
      %s212 = scalar_select %p209, %s210, %s211
      %p215 = pneg %p209
      %p216 = scmp.eq.s32.totalorder %s22, 1
      %p217 = por %p215, %p216
      %p218 = scmp.ne.s32.totalorder %s210, %s213
      %p219 = scmp.eq.s32.totalorder %s22, 0
      %p220 = por %p218, %p219
      %p221 = scmp.ne.s32.totalorder %s210, %s213
      %p222 = scmp.eq.s32.totalorder %s27, 1
      %p223 = por %p221, %p222
      %p224 = scmp.ne.s32.totalorder %s213, %s214
      %p225 = scmp.eq.s32.totalorder %s27, 0
      %p226 = por %p224, %p225
      %p227 = scmp.ne.s32.totalorder %s213, %s214
      %p228 = scmp.eq.s32.totalorder %s28, 1
      %p229 = por %p227, %p228
      %p231 = scmp.ne.s32.totalorder %s214, %s230
      %p232 = scmp.eq.s32.totalorder %s28, 0
      %p233 = por %p231, %p232
      %p234 = scmp.le.s32.totalorder 1, %s22
      %p235 = scmp.lt.s32.totalorder %s22, 3
      %p236 = pnand %p234, %p235
      %p237 = pneg %p236
      // Predicated region
      $region9: #{tpu_custom_call.1} parent=5 // pred_check
        _
      $region10: #{tpu_custom_call.1} parent=5 // pred_check_branch
        %239 = sbr.rel (%p236) target = $region12
      $region11: #{tpu_custom_call.1} parent=5 // pred_region
        %s240 = ssub.s32 %s22, 1
        // Predicated region
        $region13: #{tpu_custom_call.1} parent=11 // pred_check
          %p241 = pneg %p69
        $region14: #{tpu_custom_call.1} parent=11 // pred_check_branch
          %243 = sbr.rel (%p241) target = $region16
        $region15: #{tpu_custom_call.1} parent=11 // pred_region
          %s245 = ssub.s32 16, 16
          %246 = vsyncadd [#allocation5], %s245
          %s248 = sshll.u32 %s1, 4
          %s249 = int_to_ptr.vmem [resolvable:$true] %s248
          %251 = dma.vmem_to_smem %s249, 16, [#allocation3], [#allocation5]
        $region16: #{tpu_custom_call.1} parent=11 // pred_fallthru
          _
        // Predicated region
        $region17: #{tpu_custom_call.1} parent=11 // pred_check
          %p252 = pneg %p90
        $region18: #{tpu_custom_call.1} parent=11 // pred_check_branch
          %254 = sbr.rel (%p252) target = $region20
        $region19: #{tpu_custom_call.1} parent=11 // pred_region
          _
        $region20: #{tpu_custom_call.1} parent=11 // pred_fallthru
          _
        // Predicated region
        $region21: #{tpu_custom_call.1} parent=11 // pred_check
          %p255 = pneg %p111
        $region22: #{tpu_custom_call.1} parent=11 // pred_check_branch
          %257 = sbr.rel (%p255) target = $region24
        $region23: #{tpu_custom_call.1} parent=11 // pred_region
          _
        $region24: #{tpu_custom_call.1} parent=11 // pred_fallthru
          _
        // Predicated region
        $region25: #{tpu_custom_call.1} parent=11 // pred_check
          %p258 = pneg %p132
        $region26: #{tpu_custom_call.1} parent=11 // pred_check_branch
          %260 = sbr.rel (%p258) target = $region28
        $region27: #{tpu_custom_call.1} parent=11 // pred_region
          _
        $region28: #{tpu_custom_call.1} parent=11 // pred_fallthru
          _
        // Predicated region
        $region29: #{tpu_custom_call.1} parent=11 // pred_check
          %p261 = pneg %p153
        $region30: #{tpu_custom_call.1} parent=11 // pred_check_branch
          %263 = sbr.rel (%p261) target = $region32
        $region31: #{tpu_custom_call.1} parent=11 // pred_region
          _
        $region32: #{tpu_custom_call.1} parent=11 // pred_fallthru
          _
        // Predicated region
        $region33: #{tpu_custom_call.1} parent=11 // pred_check
          %p264 = pneg %p174
        $region34: #{tpu_custom_call.1} parent=11 // pred_check_branch
          %266 = sbr.rel (%p264) target = $region36
        $region35: #{tpu_custom_call.1} parent=11 // pred_region
          _
        $region36: #{tpu_custom_call.1} parent=11 // pred_fallthru
          _
      $region12: #{tpu_custom_call.1} parent=5 // pred_fallthru
        _
      %p267 = scmp.lt.s32.totalorder %s22, 2
      // Predicated region
      $region37: #{tpu_custom_call.1} parent=5 // pred_check
        %p268 = pneg %p267
      $region38: #{tpu_custom_call.1} parent=5 // pred_check_branch
        %270 = sbr.rel (%p268) target = $region40
      $region39: #{tpu_custom_call.1} parent=5 // pred_region
        // Predicated region
        $region41: #{tpu_custom_call.1} parent=39 // pred_check
          %p271 = pneg %p42
        $region42: #{tpu_custom_call.1} parent=39 // pred_check_branch
          %273 = sbr.rel (%p271) target = $region44
        $region43: #{tpu_custom_call.1} parent=39 // pred_region
          %p274 = scmp.lt.s32.totalorder %s22, 1
          %s275 = scalar_select %p274, %s22, 1
          %s276 = smul.addr %s275, 4
          %s277 = scalar_lea.vmem %s0, %s276
        $region44: #{tpu_custom_call.1} parent=39 // pred_fallthru
          _
      $region40: #{tpu_custom_call.1} parent=5 // pred_fallthru
        _
      %p278 = scmp.le.s32.totalorder 1, %s22
      %p279 = scmp.lt.s32.totalorder %s22, 3
      %p280 = pnand %p278, %p279
      %p281 = pneg %p280
      // Predicated region
      $region45: #{tpu_custom_call.1} parent=5 // pred_check
        _
      $region46: #{tpu_custom_call.1} parent=5 // pred_check_branch
        %283 = sbr.rel (%p280) target = $region48
      $region47: #{tpu_custom_call.1} parent=5 // pred_region
        %s284 = ssub.s32 %s22, 1
        // Predicated region
        $region49: #{tpu_custom_call.1} parent=47 // pred_check
          %p285 = pneg %p69
        $region50: #{tpu_custom_call.1} parent=47 // pred_check_branch
          %287 = sbr.rel (%p285) target = $region52
        $region51: #{tpu_custom_call.1} parent=47 // pred_region
          %288 = dma.done [#allocation5], 16
        $region52: #{tpu_custom_call.1} parent=47 // pred_fallthru
          _
        %289 = sfence
        %p290 = scmp.lt.s32.totalorder %s27, 1
        %s291 = scalar_select %p290, %s27, 1
        %s292 = smul.addr %s291, 4
        %s293 = scalar_lea.vmem %s0, %s292
        %p294 = pneg %p48
        %p295 = pneg %p45
        %p296 = pneg %p69
        %p297 = pneg %p66
        %p298 = pneg %p90
        %p299 = pneg %p87
        %p300 = pneg %p111
        %p301 = pneg %p108
        %p302 = pneg %p132
        %p303 = pneg %p129
        %p304 = pneg %p153
        %p305 = pneg %p150
        %p306 = pneg %p174
        %p307 = pneg %p171
        %p308 = pneg %p200
        %p309 = pneg %p197
        %s310 = sand.u32 %s187, 1
        %s311 = scalar_lea.sflag [#allocation4], %s310
        %s312 = sand.u32 %s187, 1
        %s313 = smul.addr %s312, 4
        %s314 = scalar_lea.vmem [#allocation6], %s313
        %p315 = pneg %p226
        %p316 = pneg %p223
        %s317 = sand.u32 %s213, 1
        %s318 = scalar_lea.sflag [#allocation8], %s317
        %s319 = sand.u32 %s213, 1
        %s320 = smul.addr %s319, 4
        %s321 = scalar_lea.vmem [#allocation7], %s320
        %p322 = scmp.lt.s32.totalorder %s27, 1
        %s323 = scalar_select %p322, %s27, 1
        %s324 = smul.addr %s323, 4
        %s325 = scalar_lea.vmem %s0, %s324
        %v326 = vld [vmem:[%s2] sm:$0xff]
        %v327 = vld [vmem:[%s2 + $0x8] sm:$0xff]
        %v328 = vld [vmem:[%s2 + $0x10] sm:$0xff]
        %v329 = vld [vmem:[%s2 + $0x18] sm:$0xff]
        %v330 = vld [vmem:[%s325] sm:$0xf]
        %v331 = vld [vmem:[%s3] sm:$0xff]
        %v332 = vld [vmem:[%s3 + $0x8] sm:$0xff]
        %v333 = vld [vmem:[%s3 + $0x10] sm:$0xff]
        %v334 = vld [vmem:[%s3 + $0x18] sm:$0xff]
        %336 = vset.pattern.permute.xlu0 0
        %337 = vperm.xlu0 %336, %v331
        %v338 = vpop.permute.xlu0 %337
        %341 = vset.pattern.permute.xlu0 0
        %342 = vperm.xlu0 %341, %v332
        %v343 = vpop.permute.xlu0 %342
        %346 = vset.pattern.permute.xlu0 0
        %347 = vperm.xlu0 %346, %v333
        %v348 = vpop.permute.xlu0 %347
        %351 = vset.pattern.permute.xlu0 0
        %352 = vperm.xlu0 %351, %v334
        %v353 = vpop.permute.xlu0 %352
        %vm355 = vcmask 31744
        %v357 = vsel %vm355, %v326, 0
        %v360 = vsel %vm355, %v327, 0
        %v363 = vsel %vm355, %v328, 0
        %v366 = vsel %vm355, %v329, 0
        %vm368 = vcmask 1043456
        %v370 = vsel %vm368, %v330, 0
        %372 = vmatprep.subr.mxu0 0.0
        %373 = vmatpush1.msra.mxu0 0.0
        %374 = vmatprep.subr.mxu0 0.0
        %375 = vmatpush1.msra.mxu0 0.0
        %376 = vmatprep.subr.mxu0 0.0
        %377 = vmatpush1.msra.mxu0 0.0
        %378 = vmatprep.subr.mxu0 0.0
        %379 = vmatpush1.msra.mxu0 0.0
        %380 = vmatprep.subr.mxu0 0.0
        %381 = vmatpush1.msra.mxu0 0.0
        %382 = vmatprep.subr.mxu0 0.0
        %383 = vmatpush1.msra.mxu0 0.0
        %384 = vmatprep.subr.mxu0 0.0
        %385 = vmatpush1.msra.mxu0 0.0
        %386 = vmatprep.subr.mxu0 0.0
        %387 = vmatpush1.msra.mxu0 0.0
        %388 = vmatprep.subr.mxu0 0.0
        %389 = vmatpush1.msra.mxu0 0.0
        %390 = vmatprep.subr.mxu0 0.0
        %391 = vmatpush1.msra.mxu0 0.0
        %392 = vmatprep.subr.mxu0 0.0
        %393 = vmatpush1.msra.mxu0 0.0
        %394 = vmatprep.subr.mxu0 0.0
        %395 = vmatpush1.msra.mxu0 0.0
        %396 = vmatprep.subr.mxu0 0.0
        %397 = vmatpush1.msra.mxu0 0.0
        %398 = vmatprep.subr.mxu0 0.0
        %399 = vmatpush1.msra.mxu0 0.0
        %400 = vmatprep.subr.mxu0 0.0
        %401 = vmatpush1.msra.mxu0 0.0
        %402 = vmatprep.subr.mxu0 0.0
        %403 = vmatpush1.msra.mxu0 %v370
        %404 = vmatprep.subr.mxu0 0.0
        %405 = vmatpush2.msra.mxu0 0.0
        %406 = vmatprep.subr.mxu0 0.0
        %407 = vmatpush2.msra.mxu0 0.0
        %408 = vmatprep.subr.mxu0 0.0
        %409 = vmatpush2.msra.mxu0 0.0
        %410 = vmatprep.subr.mxu0 0.0
        %411 = vmatpush2.msra.mxu0 0.0
        %412 = vmatprep.subr.mxu0 0.0
        %413 = vmatpush2.msra.mxu0 0.0
        %414 = vmatprep.subr.mxu0 0.0
        %415 = vmatpush2.msra.mxu0 0.0
        %416 = vmatprep.subr.mxu0 0.0
        %417 = vmatpush2.msra.mxu0 0.0
        %418 = vmatprep.subr.mxu0 0.0
        %419 = vmatpush2.msra.mxu0 0.0
        %420 = vmatprep.subr.mxu0 0.0
        %421 = vmatpush2.msra.mxu0 0.0
        %422 = vmatprep.subr.mxu0 0.0
        %423 = vmatpush2.msra.mxu0 0.0
        %424 = vmatprep.subr.mxu0 0.0
        %425 = vmatpush2.msra.mxu0 0.0
        %426 = vmatprep.subr.mxu0 0.0
        %427 = vmatpush2.msra.mxu0 0.0
        %428 = vmatprep.subr.mxu0 0.0
        %429 = vmatpush2.msra.mxu0 0.0
        %430 = vmatprep.subr.mxu0 0.0
        %431 = vmatpush2.msra.mxu0 0.0
        %432 = vmatprep.subr.mxu0 0.0
        %433 = vmatpush2.msra.mxu0 0.0
        %434 = vmatprep.subr.mxu0 0.0
        %435 = vmatpush2.msra.mxu0 0.0
        %436 = vmatprep.mubr.f32.mxu0 0.0
        %437 = vmatmul.mubr.f32.gmra.mxu0 %v357
        %v438 = vpop.f32.mrf.mxu0
        %v439 = vadd.f32 %v338, %v438
        %v440 = vpop.f32.mrf.mxu0
        %441 = vmatprep.mubr.f32.mxu0 0.0
        %442 = vmatmul.mubr.f32.gmra.mxu0 %v360
        %v443 = vpop.f32.mrf.mxu0
        %v444 = vadd.f32 %v343, %v443
        %v445 = vpop.f32.mrf.mxu0
        %446 = vmatprep.mubr.f32.mxu0 0.0
        %447 = vmatmul.mubr.f32.gmra.mxu0 %v363
        %v448 = vpop.f32.mrf.mxu0
        %v449 = vadd.f32 %v348, %v448
        %v450 = vpop.f32.mrf.mxu0
        %451 = vmatprep.mubr.f32.mxu0 0.0
        %452 = vmatmul.mubr.f32.gmra.mxu0 %v366
        %v453 = vpop.f32.mrf.mxu0
        %v454 = vadd.f32 %v353, %v453
        %v455 = vpop.f32.mrf.mxu0
        %456 = vdwg.mxu0
        %s457 = sld [smem:[#allocation3]]
        %vm458 = vcmp.ge.f32.partialorder %v439, 0.0
        %vm459 = vcmp.ge.f32.partialorder %v444, 0.0
        %vm460 = vcmp.ge.f32.partialorder %v449, 0.0
        %vm461 = vcmp.ge.f32.partialorder %v454, 0.0
        %v462 = vstv %s457
        %v463 = vmul.f32 %v462, %v439
        %v464 = vmul.f32 %v462, %v444
        %v465 = vmul.f32 %v462, %v449
        %v466 = vmul.f32 %v462, %v454
        %v467 = vsel %vm458, %v439, %v463
        %v468 = vsel %vm459, %v444, %v464
        %v469 = vsel %vm460, %v449, %v465
        %v470 = vsel %vm461, %v454, %v466
        %vm471 = vcmask 130048
        %v472 = vsel %vm471, %v467, 0.0
        %v473 = vsel %vm471, %v468, 0.0
        %v474 = vadd.f32 %v472, %v473
        %v475 = vsel %vm471, %v469, 0.0
        %v476 = vadd.f32 %v474, %v475
        %v477 = vsel %vm471, %v470, 0.0
        %v478 = vadd.f32 %v476, %v477
        %479 = vadd.xlane.f32.xlu0 %v478
        %v480 = vpop.xlane.xlu0 %479
        %v481 = vrot.slane %v480, 4
        %v482 = vadd.f32 %v480, %v481
        %v483 = vrot.slane %v482, 2
        %v484 = vadd.f32 %v482, %v483
        %v485 = vrot.slane %v484, 1
        %v486 = vadd.f32 %v484, %v485
        %s487 = vtos %v486
        %s488 = smul.f32 %s487, 0.001953125
        %v489 = vstv %s488
        %v490 = vsub.f32 %v467, %v489
        %v491 = vsub.f32 %v468, %v489
        %v492 = vsub.f32 %v469, %v489
        %v493 = vsub.f32 %v470, %v489
        %v494 = vmul.f32 %v490, %v490
        %v495 = vmul.f32 %v491, %v491
        %v496 = vmul.f32 %v492, %v492
        %v497 = vmul.f32 %v493, %v493
        %v498 = vsel %vm471, %v494, 0.0
        %v499 = vsel %vm471, %v495, 0.0
        %v500 = vadd.f32 %v498, %v499
        %v501 = vsel %vm471, %v496, 0.0
        %v502 = vadd.f32 %v500, %v501
        %v503 = vsel %vm471, %v497, 0.0
        %v504 = vadd.f32 %v502, %v503
        %505 = vadd.xlane.f32.xlu0 %v504
        %v506 = vpop.xlane.xlu0 %505
        %v507 = vrot.slane %v506, 4
        %v508 = vadd.f32 %v506, %v507
        %v509 = vrot.slane %v508, 2
        %v510 = vadd.f32 %v508, %v509
        %v511 = vrot.slane %v510, 1
        %v512 = vadd.f32 %v510, %v511
        %s513 = vtos %v512
        %s514 = smul.f32 %s513, 0.001953125
        %s515 = sadd.f32 %s514, 1e-08
        %v516 = vstv %s515
        %v517 = vrsqrt.pop %v516
        %s518 = vtos %v517
        %v519 = vstv %s518
        %v520 = vmul.f32 %v331, %v519
        %v521 = vmul.f32 %v332, %v519
        %v522 = vmul.f32 %v333, %v519
        %v523 = vmul.f32 %v334, %v519
        %525 = vset.pattern.permute.xlu0 1
        %526 = vperm.xlu0 %525, %v520
        %v527 = vpop.permute.xlu0 %526
        %530 = vset.pattern.permute.xlu0 1
        %531 = vperm.xlu0 %530, %v521
        %v532 = vpop.permute.xlu0 %531
        %535 = vset.pattern.permute.xlu0 1
        %536 = vperm.xlu0 %535, %v522
        %v537 = vpop.permute.xlu0 %536
        %540 = vset.pattern.permute.xlu0 1
        %541 = vperm.xlu0 %540, %v523
        %v542 = vpop.permute.xlu0 %541
        %v544 = vmul.f32 %v490, %v527
        %v545 = vmul.f32 %v491, %v532
        %v546 = vmul.f32 %v492, %v537
        %v547 = vmul.f32 %v493, %v542
        %548 = vset.pattern.permute.xlu0 2
        %549 = vperm.xlu0 %548, %v331
        %v550 = vpop.permute.xlu0 %549
        %552 = vset.pattern.permute.xlu0 2
        %553 = vperm.xlu0 %552, %v332
        %v554 = vpop.permute.xlu0 %553
        %556 = vset.pattern.permute.xlu0 2
        %557 = vperm.xlu0 %556, %v333
        %v558 = vpop.permute.xlu0 %557
        %560 = vset.pattern.permute.xlu0 2
        %561 = vperm.xlu0 %560, %v334
        %v562 = vpop.permute.xlu0 %561
        %v564 = vadd.f32 %v544, %v550
        %v565 = vadd.f32 %v545, %v554
        %v566 = vadd.f32 %v546, %v558
        %v567 = vadd.f32 %v547, %v562
        %vm568 = vcmask 7168
        %569 = vst.msk [vmem:[#allocation2] sm:$0xff] %vm568, 0.0
        %570 = vst.msk [vmem:[#allocation2 + $0x8] sm:$0xff] %vm568, 0.0
        %571 = vst.msk [vmem:[#allocation2 + $0x10] sm:$0xff] %vm568, 0.0
        %572 = vst.msk [vmem:[#allocation2 + $0x18] sm:$0xff] %vm568, 0.0
        %vm573 = vcmask 146568
        %574 = vst.msk [vmem:[#allocation2] sm:$0xff] %vm573, 0.0
        %575 = vst.msk [vmem:[#allocation2 + $0x8] sm:$0xff] %vm573, 0.0
        %576 = vst.msk [vmem:[#allocation2 + $0x10] sm:$0xff] %vm573, 0.0
        %577 = vst.msk [vmem:[#allocation2 + $0x18] sm:$0xff] %vm573, 0.0
        %582 = vrot.lane.b32.xlu0 %v564, 1
        %v583 = vpop.permute.xlu0 %582
        %584 = vrot.lane.b32.xlu0 %v565, 1
        %v585 = vpop.permute.xlu0 %584
        %586 = vrot.lane.b32.xlu0 %v566, 1
        %v587 = vpop.permute.xlu0 %586
        %588 = vrot.lane.b32.xlu0 %v567, 1
        %v589 = vpop.permute.xlu0 %588
        %vm594 = vcmask 138248
        %595 = vst.msk [vmem:[#allocation2] sm:$0xff] %vm594, %v583
        %596 = vst.msk [vmem:[#allocation2 + $0x8] sm:$0xff] %vm594, %v585
        %597 = vst.msk [vmem:[#allocation2 + $0x10] sm:$0xff] %vm594, %v587
        %598 = vst.msk [vmem:[#allocation2 + $0x18] sm:$0xff] %vm594, %v589
        %v599 = vld [vmem:[%s3] sm:$0xff]
        %v600 = vld [vmem:[%s3 + $0x8] sm:$0xff]
        %v601 = vld [vmem:[%s3 + $0x10] sm:$0xff]
        %v602 = vld [vmem:[%s3 + $0x18] sm:$0xff]
        %v603 = vld [vmem:[#allocation2] sm:$0xff]
        %v604 = vld [vmem:[#allocation2 + $0x8] sm:$0xff]
        %v605 = vld [vmem:[#allocation2 + $0x10] sm:$0xff]
        %v606 = vld [vmem:[#allocation2 + $0x18] sm:$0xff]
        %608 = vset.pattern.permute.xlu0 6
        %609 = vperm.xlu0 %608, %v599
        %v610 = vpop.permute.xlu0 %609
        %613 = vset.pattern.permute.xlu0 6
        %614 = vperm.xlu0 %613, %v600
        %v615 = vpop.permute.xlu0 %614
        %618 = vset.pattern.permute.xlu0 6
        %619 = vperm.xlu0 %618, %v601
        %v620 = vpop.permute.xlu0 %619
        %623 = vset.pattern.permute.xlu0 6
        %624 = vperm.xlu0 %623, %v602
        %v625 = vpop.permute.xlu0 %624
        %v627 = vmul.f32 %v610, %v603
        %v628 = vmul.f32 %v615, %v604
        %v629 = vmul.f32 %v620, %v605
        %v630 = vmul.f32 %v625, %v606
        %631 = vset.pattern.permute.xlu0 3
        %632 = vperm.xlu0 %631, %v599
        %v633 = vpop.permute.xlu0 %632
        %635 = vset.pattern.permute.xlu0 3
        %636 = vperm.xlu0 %635, %v600
        %v637 = vpop.permute.xlu0 %636
        %639 = vset.pattern.permute.xlu0 3
        %640 = vperm.xlu0 %639, %v601
        %v641 = vpop.permute.xlu0 %640
        %643 = vset.pattern.permute.xlu0 3
        %644 = vperm.xlu0 %643, %v602
        %v645 = vpop.permute.xlu0 %644
        %v647 = vadd.f32 %v633, %v627
        %v648 = vadd.f32 %v637, %v628
        %v649 = vadd.f32 %v641, %v629
        %v650 = vadd.f32 %v645, %v630
        %651 = vset.pattern.permute.xlu0 7
        %652 = vperm.xlu0 %651, %v599
        %v653 = vpop.permute.xlu0 %652
        %655 = vset.pattern.permute.xlu0 7
        %656 = vperm.xlu0 %655, %v600
        %v657 = vpop.permute.xlu0 %656
        %659 = vset.pattern.permute.xlu0 7
        %660 = vperm.xlu0 %659, %v601
        %v661 = vpop.permute.xlu0 %660
        %663 = vset.pattern.permute.xlu0 7
        %664 = vperm.xlu0 %663, %v602
        %v665 = vpop.permute.xlu0 %664
        %v667 = vmul.f32 %v653, %v603
        %v668 = vmul.f32 %v657, %v604
        %v669 = vmul.f32 %v661, %v605
        %v670 = vmul.f32 %v665, %v606
        %675 = vrot.lane.b32.xlu0 %v667, 127
        %v676 = vpop.permute.xlu0 %675
        %677 = vrot.lane.b32.xlu0 %v668, 127
        %v678 = vpop.permute.xlu0 %677
        %679 = vrot.lane.b32.xlu0 %v669, 127
        %v680 = vpop.permute.xlu0 %679
        %681 = vrot.lane.b32.xlu0 %v670, 127
        %v682 = vpop.permute.xlu0 %681
        %v687 = vadd.f32 %v647, %v676
        %v688 = vadd.f32 %v648, %v678
        %v689 = vadd.f32 %v649, %v680
        %v690 = vadd.f32 %v650, %v682
        %691 = vset.pattern.permute.xlu0 8
        %692 = vperm.xlu0 %691, %v599
        %v693 = vpop.permute.xlu0 %692
        %695 = vset.pattern.permute.xlu0 8
        %696 = vperm.xlu0 %695, %v600
        %v697 = vpop.permute.xlu0 %696
        %699 = vset.pattern.permute.xlu0 8
        %700 = vperm.xlu0 %699, %v601
        %v701 = vpop.permute.xlu0 %700
        %703 = vset.pattern.permute.xlu0 8
        %704 = vperm.xlu0 %703, %v602
        %v705 = vpop.permute.xlu0 %704
        %v707 = vmul.f32 %v693, %v603
        %v708 = vmul.f32 %v697, %v604
        %v709 = vmul.f32 %v701, %v605
        %v710 = vmul.f32 %v705, %v606
        %715 = vrot.lane.b32.xlu0 %v707, 126
        %v716 = vpop.permute.xlu0 %715
        %717 = vrot.lane.b32.xlu0 %v708, 126
        %v718 = vpop.permute.xlu0 %717
        %719 = vrot.lane.b32.xlu0 %v709, 126
        %v720 = vpop.permute.xlu0 %719
        %721 = vrot.lane.b32.xlu0 %v710, 126
        %v722 = vpop.permute.xlu0 %721
        %v727 = vadd.f32 %v687, %v716
        %v728 = vadd.f32 %v688, %v718
        %v729 = vadd.f32 %v689, %v720
        %v730 = vadd.f32 %v690, %v722
        %s731 = sld [smem:[#allocation3 + $0x1]]
        %vm732 = vcmp.ge.f32.partialorder %v727, 0.0
        %vm733 = vcmp.ge.f32.partialorder %v728, 0.0
        %vm734 = vcmp.ge.f32.partialorder %v729, 0.0
        %vm735 = vcmp.ge.f32.partialorder %v730, 0.0
        %v736 = vstv %s731
        %v737 = vmul.f32 %v736, %v727
        %v738 = vmul.f32 %v736, %v728
        %v739 = vmul.f32 %v736, %v729
        %v740 = vmul.f32 %v736, %v730
        %v741 = vsel %vm732, %v727, %v737
        %v742 = vsel %vm733, %v728, %v738
        %v743 = vsel %vm734, %v729, %v739
        %v744 = vsel %vm735, %v730, %v740
        %v745 = vsel %vm471, %v741, 0.0
        %v746 = vsel %vm471, %v742, 0.0
        %v747 = vadd.f32 %v745, %v746
        %v748 = vsel %vm471, %v743, 0.0
        %v749 = vadd.f32 %v747, %v748
        %v750 = vsel %vm471, %v744, 0.0
        %v751 = vadd.f32 %v749, %v750
        %752 = vadd.xlane.f32.xlu0 %v751
        %v753 = vpop.xlane.xlu0 %752
        %v754 = vrot.slane %v753, 4
        %v755 = vadd.f32 %v753, %v754
        %v756 = vrot.slane %v755, 2
        %v757 = vadd.f32 %v755, %v756
        %v758 = vrot.slane %v757, 1
        %v759 = vadd.f32 %v757, %v758
        %s760 = vtos %v759
        %s761 = smul.f32 %s760, 0.001953125
        %v762 = vstv %s761
        %v763 = vsub.f32 %v741, %v762
        %v764 = vsub.f32 %v742, %v762
        %v765 = vsub.f32 %v743, %v762
        %v766 = vsub.f32 %v744, %v762
        %v767 = vmul.f32 %v763, %v763
        %v768 = vmul.f32 %v764, %v764
        %v769 = vmul.f32 %v765, %v765
        %v770 = vmul.f32 %v766, %v766
        %v771 = vsel %vm471, %v767, 0.0
        %v772 = vsel %vm471, %v768, 0.0
        %v773 = vadd.f32 %v771, %v772
        %v774 = vsel %vm471, %v769, 0.0
        %v775 = vadd.f32 %v773, %v774
        %v776 = vsel %vm471, %v770, 0.0
        %v777 = vadd.f32 %v775, %v776
        %778 = vadd.xlane.f32.xlu0 %v777
        %v779 = vpop.xlane.xlu0 %778
        %v780 = vrot.slane %v779, 4
        %v781 = vadd.f32 %v779, %v780
        %v782 = vrot.slane %v781, 2
        %v783 = vadd.f32 %v781, %v782
        %v784 = vrot.slane %v783, 1
        %v785 = vadd.f32 %v783, %v784
        %s786 = vtos %v785
        %s787 = smul.f32 %s786, 0.001953125
        %s788 = sadd.f32 %s787, 1e-08
        %v789 = vstv %s788
        %v790 = vrsqrt.pop %v789
        %s791 = vtos %v790
        %v792 = vstv %s791
        %v793 = vmul.f32 %v599, %v792
        %v794 = vmul.f32 %v600, %v792
        %v795 = vmul.f32 %v601, %v792
        %v796 = vmul.f32 %v602, %v792
        %798 = vset.pattern.permute.xlu0 4
        %799 = vperm.xlu0 %798, %v793
        %v800 = vpop.permute.xlu0 %799
        %803 = vset.pattern.permute.xlu0 4
        %804 = vperm.xlu0 %803, %v794
        %v805 = vpop.permute.xlu0 %804
        %808 = vset.pattern.permute.xlu0 4
        %809 = vperm.xlu0 %808, %v795
        %v810 = vpop.permute.xlu0 %809
        %813 = vset.pattern.permute.xlu0 4
        %814 = vperm.xlu0 %813, %v796
        %v815 = vpop.permute.xlu0 %814
        %v817 = vmul.f32 %v763, %v800
        %v818 = vmul.f32 %v764, %v805
        %v819 = vmul.f32 %v765, %v810
        %v820 = vmul.f32 %v766, %v815
        %821 = vset.pattern.permute.xlu0 5
        %822 = vperm.xlu0 %821, %v599
        %v823 = vpop.permute.xlu0 %822
        %825 = vset.pattern.permute.xlu0 5
        %826 = vperm.xlu0 %825, %v600
        %v827 = vpop.permute.xlu0 %826
        %829 = vset.pattern.permute.xlu0 5
        %830 = vperm.xlu0 %829, %v601
        %v831 = vpop.permute.xlu0 %830
        %833 = vset.pattern.permute.xlu0 5
        %834 = vperm.xlu0 %833, %v602
        %v835 = vpop.permute.xlu0 %834
        %v837 = vadd.f32 %v817, %v823
        %v838 = vadd.f32 %v818, %v827
        %v839 = vadd.f32 %v819, %v831
        %v840 = vadd.f32 %v820, %v835
        %v841 = vld [vmem:[%s4] sm:$0xf]
        %v842 = vld [vmem:[%s6] sm:$0xf]
        %844 = vset.pattern.permute.xlu0 0
        %845 = vperm.xlu0 %844, %v842
        %v846 = vpop.permute.xlu0 %845
        %vm848 = vcmask 261120
        %v850 = vsel %vm848, %v841, 0
        %852 = vmatprep.subr.mxu0 0.0
        %853 = vmatpush1.msra.mxu0 0.0
        %854 = vmatprep.subr.mxu0 0.0
        %855 = vmatpush1.msra.mxu0 0.0
        %856 = vmatprep.subr.mxu0 0.0
        %857 = vmatpush1.msra.mxu0 0.0
        %858 = vmatprep.subr.mxu0 0.0
        %859 = vmatpush1.msra.mxu0 0.0
        %860 = vmatprep.subr.mxu0 0.0
        %861 = vmatpush1.msra.mxu0 0.0
        %862 = vmatprep.subr.mxu0 0.0
        %863 = vmatpush1.msra.mxu0 0.0
        %864 = vmatprep.subr.mxu0 0.0
        %865 = vmatpush1.msra.mxu0 0.0
        %866 = vmatprep.subr.mxu0 0.0
        %867 = vmatpush1.msra.mxu0 0.0
        %868 = vmatprep.subr.mxu0 0.0
        %869 = vmatpush1.msra.mxu0 0.0
        %870 = vmatprep.subr.mxu0 0.0
        %871 = vmatpush1.msra.mxu0 0.0
        %872 = vmatprep.subr.mxu0 0.0
        %873 = vmatpush1.msra.mxu0 0.0
        %874 = vmatprep.subr.mxu0 0.0
        %875 = vmatpush1.msra.mxu0 0.0
        %876 = vmatprep.subr.mxu0 0.0
        %877 = vmatpush1.msra.mxu0 %v840
        %878 = vmatprep.subr.mxu0 0.0
        %879 = vmatpush1.msra.mxu0 %v839
        %880 = vmatprep.subr.mxu0 0.0
        %881 = vmatpush1.msra.mxu0 %v838
        %882 = vmatprep.subr.mxu0 0.0
        %883 = vmatpush1.msra.mxu0 %v837
        %884 = vmatprep.subr.mxu0 0.0
        %885 = vmatpush2.msra.mxu0 0.0
        %886 = vmatprep.subr.mxu0 0.0
        %887 = vmatpush2.msra.mxu0 0.0
        %888 = vmatprep.subr.mxu0 0.0
        %889 = vmatpush2.msra.mxu0 0.0
        %890 = vmatprep.subr.mxu0 0.0
        %891 = vmatpush2.msra.mxu0 0.0
        %892 = vmatprep.subr.mxu0 0.0
        %893 = vmatpush2.msra.mxu0 0.0
        %894 = vmatprep.subr.mxu0 0.0
        %895 = vmatpush2.msra.mxu0 0.0
        %896 = vmatprep.subr.mxu0 0.0
        %897 = vmatpush2.msra.mxu0 0.0
        %898 = vmatprep.subr.mxu0 0.0
        %899 = vmatpush2.msra.mxu0 0.0
        %900 = vmatprep.subr.mxu0 0.0
        %901 = vmatpush2.msra.mxu0 0.0
        %902 = vmatprep.subr.mxu0 0.0
        %903 = vmatpush2.msra.mxu0 0.0
        %904 = vmatprep.subr.mxu0 0.0
        %905 = vmatpush2.msra.mxu0 0.0
        %906 = vmatprep.subr.mxu0 0.0
        %907 = vmatpush2.msra.mxu0 0.0
        %908 = vmatprep.subr.mxu0 0.0
        %909 = vmatpush2.msra.mxu0 0.0
        %910 = vmatprep.subr.mxu0 0.0
        %911 = vmatpush2.msra.mxu0 0.0
        %912 = vmatprep.subr.mxu0 0.0
        %913 = vmatpush2.msra.mxu0 0.0
        %914 = vmatprep.subr.mxu0 0.0
        %915 = vmatpush2.msra.mxu0 0.0
        %916 = vmatprep.mubr.f32.mxu0 0.0
        %917 = vmatmul.mubr.f32.gmra.mxu0 %v850
        %v918 = vpop.f32.mrf.mxu0
        %v919 = vadd.f32 %v846, %v918
        %v920 = vpop.f32.mrf.mxu0
        %921 = vdwg.mxu0
        %vm922 = vcmask 125952
        %923 = vst.msk [vmem:[%s314] sm:$0xf] %vm922, %v919
        %v924 = vld [vmem:[%s5] sm:$0xf]
        %v925 = vld [vmem:[%s6] sm:$0xf]
        %927 = vset.pattern.permute.xlu0 1
        %928 = vperm.xlu0 %927, %v925
        %v929 = vpop.permute.xlu0 %928
        %v932 = vsel %vm848, %v924, 0
        %934 = vmatprep.subr.mxu0 0.0
        %935 = vmatpush1.msra.mxu0 0.0
        %936 = vmatprep.subr.mxu0 0.0
        %937 = vmatpush1.msra.mxu0 0.0
        %938 = vmatprep.subr.mxu0 0.0
        %939 = vmatpush1.msra.mxu0 0.0
        %940 = vmatprep.subr.mxu0 0.0
        %941 = vmatpush1.msra.mxu0 0.0
        %942 = vmatprep.subr.mxu0 0.0
        %943 = vmatpush1.msra.mxu0 0.0
        %944 = vmatprep.subr.mxu0 0.0
        %945 = vmatpush1.msra.mxu0 0.0
        %946 = vmatprep.subr.mxu0 0.0
        %947 = vmatpush1.msra.mxu0 0.0
        %948 = vmatprep.subr.mxu0 0.0
        %949 = vmatpush1.msra.mxu0 0.0
        %950 = vmatprep.subr.mxu0 0.0
        %951 = vmatpush1.msra.mxu0 0.0
        %952 = vmatprep.subr.mxu0 0.0
        %953 = vmatpush1.msra.mxu0 0.0
        %954 = vmatprep.subr.mxu0 0.0
        %955 = vmatpush1.msra.mxu0 0.0
        %956 = vmatprep.subr.mxu0 0.0
        %957 = vmatpush1.msra.mxu0 0.0
        %958 = vmatprep.subr.mxu0 0.0
        %959 = vmatpush1.msra.mxu0 %v840
        %960 = vmatprep.subr.mxu0 0.0
        %961 = vmatpush1.msra.mxu0 %v839
        %962 = vmatprep.subr.mxu0 0.0
        %963 = vmatpush1.msra.mxu0 %v838
        %964 = vmatprep.subr.mxu0 0.0
        %965 = vmatpush1.msra.mxu0 %v837
        %966 = vmatprep.subr.mxu0 0.0
        %967 = vmatpush2.msra.mxu0 0.0
        %968 = vmatprep.subr.mxu0 0.0
        %969 = vmatpush2.msra.mxu0 0.0
        %970 = vmatprep.subr.mxu0 0.0
        %971 = vmatpush2.msra.mxu0 0.0
        %972 = vmatprep.subr.mxu0 0.0
        %973 = vmatpush2.msra.mxu0 0.0
        %974 = vmatprep.subr.mxu0 0.0
        %975 = vmatpush2.msra.mxu0 0.0
        %976 = vmatprep.subr.mxu0 0.0
        %977 = vmatpush2.msra.mxu0 0.0
        %978 = vmatprep.subr.mxu0 0.0
        %979 = vmatpush2.msra.mxu0 0.0
        %980 = vmatprep.subr.mxu0 0.0
        %981 = vmatpush2.msra.mxu0 0.0
        %982 = vmatprep.subr.mxu0 0.0
        %983 = vmatpush2.msra.mxu0 0.0
        %984 = vmatprep.subr.mxu0 0.0
        %985 = vmatpush2.msra.mxu0 0.0
        %986 = vmatprep.subr.mxu0 0.0
        %987 = vmatpush2.msra.mxu0 0.0
        %988 = vmatprep.subr.mxu0 0.0
        %989 = vmatpush2.msra.mxu0 0.0
        %990 = vmatprep.subr.mxu0 0.0
        %991 = vmatpush2.msra.mxu0 0.0
        %992 = vmatprep.subr.mxu0 0.0
        %993 = vmatpush2.msra.mxu0 0.0
        %994 = vmatprep.subr.mxu0 0.0
        %995 = vmatpush2.msra.mxu0 0.0
        %996 = vmatprep.subr.mxu0 0.0
        %997 = vmatpush2.msra.mxu0 0.0
        %998 = vmatprep.mubr.f32.mxu0 0.0
        %999 = vmatmul.mubr.f32.gmra.mxu0 %v932
        %v1000 = vpop.f32.mrf.mxu0
        %v1001 = vadd.f32 %v929, %v1000
        %v1002 = vpop.f32.mrf.mxu0
        %1003 = vdwg.mxu0
        %1004 = vst.msk [vmem:[%s321] sm:$0xf] %vm922, %v1001
        %s1005 = sand.u32 %s187, 1
        %s1006 = scalar_lea.sflag [#allocation4], %s1005
        %s1007 = sand.u32 %s187, 1
        %s1008 = smul.addr %s1007, 4
        %s1009 = scalar_lea.vmem [#allocation6], %s1008
        %s1010 = sand.u32 %s213, 1
        %s1011 = scalar_lea.sflag [#allocation8], %s1010
        %s1012 = sand.u32 %s213, 1
        %s1013 = smul.addr %s1012, 4
        %s1014 = scalar_lea.vmem [#allocation7], %s1013
        // Predicated region
        $region53: #{tpu_custom_call.1} parent=47 // pred_check
          %p1015 = pneg %p197
        $region54: #{tpu_custom_call.1} parent=47 // pred_check_branch
          %1017 = sbr.rel (%p1015) target = $region56
        $region55: #{tpu_custom_call.1} parent=47 // pred_region
          %s1019 = ssub.s32 64, 64
          %1020 = vsyncadd %s1006, %s1019
          %s1021 = smul.addr %s27, 64
          %s1022 = scalar_lea.hbm %s7, %s1021
          %s1024 = sshll.u32 %s1009, 4
          %s1025 = int_to_ptr.vmem [resolvable:$true] %s1024
          %1027 = dma.vmem_to_hbm [thread:$0]  %s1025, 64, %s1022, %s1006
        $region56: #{tpu_custom_call.1} parent=47 // pred_fallthru
          _
        // Predicated region
        $region57: #{tpu_custom_call.1} parent=47 // pred_check
          %p1028 = pneg %p223
        $region58: #{tpu_custom_call.1} parent=47 // pred_check_branch
          %1030 = sbr.rel (%p1028) target = $region60
        $region59: #{tpu_custom_call.1} parent=47 // pred_region
          %s1032 = ssub.s32 64, 64
          %1033 = vsyncadd %s1011, %s1032
          %s1034 = smul.addr %s27, 64
          %s1035 = scalar_lea.hbm %s8, %s1034
          %s1037 = sshll.u32 %s1014, 4
          %s1038 = int_to_ptr.vmem [resolvable:$true] %s1037
          %1040 = dma.vmem_to_hbm [thread:$0]  %s1038, 64, %s1035, %s1011
        $region60: #{tpu_custom_call.1} parent=47 // pred_fallthru
          _
      $region48: #{tpu_custom_call.1} parent=5 // pred_fallthru
        _
      %p1041 = scmp.le.s32.totalorder 2, %s22
      // Predicated region
      $region61: #{tpu_custom_call.1} parent=5 // pred_check
        %p1042 = pneg %p1041
      $region62: #{tpu_custom_call.1} parent=5 // pred_check_branch
        %1044 = sbr.rel (%p1042) target = $region64
      $region63: #{tpu_custom_call.1} parent=5 // pred_region
        %s1045 = ssub.s32 %s22, 2
        // Predicated region
        $region65: #{tpu_custom_call.1} parent=63 // pred_check
          %p1046 = pneg %p203
        $region66: #{tpu_custom_call.1} parent=63 // pred_check_branch
          %1048 = sbr.rel (%p1046) target = $region68
        $region67: #{tpu_custom_call.1} parent=63 // pred_region
          %s1049 = sand.u32 %s188, 1
          %s1050 = scalar_lea.sflag [#allocation4], %s1049
          %s1051 = sand.u32 %s188, 1
          %s1052 = smul.addr %s1051, 4
          %s1053 = scalar_lea.vmem [#allocation6], %s1052
          %1054 = dma.done %s1050, 64
        $region68: #{tpu_custom_call.1} parent=63 // pred_fallthru
          _
        // Predicated region
        $region69: #{tpu_custom_call.1} parent=63 // pred_check
          %p1055 = pneg %p229
        $region70: #{tpu_custom_call.1} parent=63 // pred_check_branch
          %1057 = sbr.rel (%p1055) target = $region72
        $region71: #{tpu_custom_call.1} parent=63 // pred_region
          %s1058 = sand.u32 %s214, 1
          %s1059 = scalar_lea.sflag [#allocation8], %s1058
          %s1060 = sand.u32 %s214, 1
          %s1061 = smul.addr %s1060, 4
          %s1062 = scalar_lea.vmem [#allocation7], %s1061
          %1063 = dma.done %s1059, 64
        $region72: #{tpu_custom_call.1} parent=63 // pred_fallthru
          _
      $region64: #{tpu_custom_call.1} parent=5 // pred_fallthru
        _
    $region6: #{tpu_custom_call.1} parent=1 // loop_footer
      %s26 = sadd.s32 1, %s22
    $region7: #{tpu_custom_call.1} parent=1 // loop_footer_branch
      %21 = sbr.rel target = $region3
    $region8: #{tpu_custom_call.1} parent=1 // loop_exit
      _
    %1064 = vsyncpa [#allocation4], 1
    %s1065 = scalar_lea.sflag [#allocation4], 1
    %1066 = vsyncpa %s1065, 1
    %1067 = vsyncpa [#allocation8], 1
    %s1068 = scalar_lea.sflag [#allocation8], 1
    %1069 = vsyncpa %s1068, 1
    %1070 = vsyncpa [#allocation5], 1
    %s1071 = scalar_lea.sflag [#allocation5], 1
    %1072 = vsyncpa %s1071, 1

</llo_original>
